<compile_context>
chip_gen: v7x
topology: tpu7x:2x2x1
jax: 0.10.0
libtpu: 0.0.40
codegen_flags: <defaults>
</compile_context>

<pallas_src>
import jax
import jax.numpy as jnp
from jax.experimental import pallas as pl
from jax.experimental.pallas import tpu as pltpu


def _pos_embed_kernel_2d(row0_ref, pos_ref, x_ref, o_ref):
    # row0_ref: (1, D)         cls_token + pos_embed[:, 0]   (shared, single-buffered)
    # pos_ref:  (1, N*D)       pos_embed rows 1..N flattened (shared, single-buffered)
    # x_ref:    (Bb, N*D)      this batch-tile's patch tokens, flattened
    # o_ref:    (Bb, (N+1)*D)  flattened output tile
    bb = o_ref.shape[0]
    d = row0_ref.shape[1]
    # Row 0 (cls + pos[0]) identical for every batch element: lane-aligned broadcast store.
    o_ref[:, :d] = jnp.broadcast_to(row0_ref[...], (bb, d)).astype(o_ref.dtype)
    # Rows 1..N: add in the storage dtype (no f32 temporaries -> no extra VALU/store work).
    o_ref[:, d:] = (x_ref[...] + pos_ref[...]).astype(o_ref.dtype)


def _pos_embed_kernel_3d(row0_ref, pos_ref, x_ref, o_ref):
    # Fallback path when D is not a multiple of 128 (layout not lane-dense but correct).
    # row0_ref: (1, 1, D); pos_ref: (1, N, D); x_ref: (Bb, N, D); o_ref: (Bb, N+1, D)
    bb = o_ref.shape[0]
    d = o_ref.shape[2]
    o_ref[:, :1, :] = jnp.broadcast_to(row0_ref[...], (bb, 1, d)).astype(o_ref.dtype)
    o_ref[:, 1:, :] = (x_ref[...] + pos_ref[...]).astype(o_ref.dtype)


def positional_embedding(x, cls_token, pos_embed, *, batch_block=None,
                         vmem_limit_bytes=32 * 1024 * 1024,
                         target_grid_steps=8):
    """x: (B, N, D); cls_token: (1, 1, D); pos_embed: (1, >=N+1, D) -> (B, N+1, D)."""
    B, N, D = x.shape
    if cls_token.shape != (1, 1, D):
        raise ValueError(f"cls_token must be (1,1,{D}), got {cls_token.shape}")
    if pos_embed.ndim != 3 or pos_embed.shape[0] != 1 or pos_embed.shape[2] != D:
        raise ValueError(f"pos_embed must be (1, P, {D}), got {pos_embed.shape}")
    if pos_embed.shape[1] < N + 1:
        raise ValueError(
            f"pos_embed has {pos_embed.shape[1]} positions, need >= {N + 1}")

    out_dtype = x.dtype
    itemsize = jnp.dtype(out_dtype).itemsize
    sublane = max(8, 32 // itemsize)            # 8 f32 / 16 bf16 / 32 int8

    # Cast params once to the storage dtype; all adds (hoisted cls row and in-kernel
    # body rows) then happen in the same dtype -> consistent precision, bf16 HBM traffic.
    cls = cls_token.astype(out_dtype)
    pos = pos_embed[:, :N + 1, :].astype(out_dtype)
    row0 = cls + pos[:, :1, :]                  # (1, 1, D), identical for every batch elem
    pos_body = pos[:, 1:, :]                    # (1, N, D)

    # ---- Block sizing: target ~target_grid_steps grid iterations (even, >= 2) so the
    # DMA-in / compute / DMA-out pipeline overlaps, round Bb to the sublane multiple,
    # clamp against an honest VMEM budget (shared single-buffered blocks included).
    if batch_block is None:
        bb = max(1, pl.cdiv(B, target_grid_steps))
        bb = min(B, pl.cdiv(bb, sublane) * sublane)
        shared_bytes = (N * D + D) * itemsize                    # pos_body + row0, Buffered(1)
        per_sample = 2 * (N * D + (N + 1) * D) * itemsize        # double-buffered x + out rows
        budget = (vmem_limit_bytes * 3) // 4 - shared_bytes      # headroom for compiler scratch
        max_bb = max(1, budget // max(per_sample, 1))
        if max_bb < bb:
            bb = (max_bb // sublane) * sublane if max_bb >= sublane else max_bb
            bb = max(1, bb)
        batch_block = int(bb)
    Bb = int(batch_block)
    grid = (pl.cdiv(B, Bb),)

    out_bytes = B * (N + 1) * D * itemsize
    in_bytes = (x.size + pos_body.size + row0.size) * itemsize
    cost = pl.CostEstimate(flops=B * N * D,          # cls row is a broadcast, not an add
                           transcendentals=0,
                           bytes_accessed=in_bytes + out_bytes)
    cparams = pltpu.CompilerParams(
        dimension_semantics=("parallel",),            # megacore sharding on v7x; no-op v5e/v6e
        vmem_limit_bytes=vmem_limit_bytes,
    )

    # Lane-dense flattened layout requires the batch tile (the new sublane dim) to be a
    # multiple of 8 or the full batch.
    use_2d = (D % 128 == 0) and (Bb % 8 == 0 or Bb == B)

    if use_2d:
        x2 = x.reshape(B, N * D)                      # contiguous reshape: free
        pos2 = pos_body.reshape(1, N * D)
        row02 = row0.reshape(1, D)
        out2 = pl.pallas_call(
            _pos_embed_kernel_2d,
            out_shape=jax.ShapeDtypeStruct((B, (N + 1) * D), out_dtype),
            grid_spec=pltpu.PrefetchScalarGridSpec(
                num_scalar_prefetch=0,
                grid=grid,
                in_specs=[
                    pl.BlockSpec((1, D), lambda b: (0, 0),
                                 pipeline_mode=pl.Buffered(1)),        # constant index
                    pl.BlockSpec((1, N * D), lambda b: (0, 0),
                                 pipeline_mode=pl.Buffered(1)),        # constant index
                    pl.BlockSpec((Bb, N * D), lambda b: (b, 0)),
                ],
                out_specs=pl.BlockSpec((Bb, (N + 1) * D), lambda b: (b, 0)),
            ),
            compiler_params=cparams,
            cost_estimate=cost,
        )(row02, pos2, x2)
        return out2.reshape(B, N + 1, D)

    # 3D fallback (arbitrary D).
    return pl.pallas_call(
        _pos_embed_kernel_3d,
        out_shape=jax.ShapeDtypeStruct((B, N + 1, D), out_dtype),
        grid_spec=pltpu.PrefetchScalarGridSpec(
            num_scalar_prefetch=0,
            grid=grid,
            in_specs=[
                pl.BlockSpec((1, 1, D), lambda b: (0, 0, 0),
                             pipeline_mode=pl.Buffered(1)),
                pl.BlockSpec((1, N, D), lambda b: (0, 0, 0),
                             pipeline_mode=pl.Buffered(1)),
                pl.BlockSpec((Bb, N, D), lambda b: (b, 0, 0)),
            ],
            out_specs=pl.BlockSpec((Bb, N + 1, D), lambda b: (b, 0, 0)),
        ),
        compiler_params=cparams,
        cost_estimate=cost,
    )(row0, pos_body, x)


if __name__ == "__main__":
    key = jax.random.PRNGKey(0)
    k1, k2, k3, k4 = jax.random.split(key, 4)

    def ref_fn(x, cls_token, pos_embed):
        B, N, D = x.shape
        return (jnp.concatenate([jnp.broadcast_to(cls_token, (B, 1, D)), x], axis=1)
                + pos_embed[:, :N + 1])

    # Case 1: small module-like shapes (batch=2, num_patches=8, embed_dim=32) -> 3D path.
    B, N, D = 2, 8, 32
    x = jax.random.normal(k1, (B, N, D), dtype=jnp.float32)
    cls_token = jnp.zeros((1, 1, D), dtype=jnp.float32)     # nn.Parameter(torch.zeros(...))
    pos_embed = jax.random.normal(k2, (1, N + 1, D), dtype=jnp.float32)
    out = jax.block_until_ready(positional_embedding(x, cls_token, pos_embed))
    assert out.shape == (B, N + 1, D)
    assert jnp.allclose(out, ref_fn(x, cls_token, pos_embed), atol=1e-6), "3D path mismatch"

    # Case 2: lane-dense embed dim (D % 128 == 0, like real ViT dims) -> flattened 2D path.
    B, N, D = 2, 8, 128
    x = jax.random.normal(k3, (B, N, D), dtype=jnp.float32)
    cls_token = jnp.zeros((1, 1, D), dtype=jnp.float32)
    pos_embed = jax.random.normal(k4, (1, N + 1, D), dtype=jnp.float32)
    out = jax.block_until_ready(positional_embedding(x, cls_token, pos_embed))
    assert out.shape == (B, N + 1, D)
    assert jnp.allclose(out, ref_fn(x, cls_token, pos_embed), atol=1e-6), "2D path mismatch"

    print("KERNEL_OK")
</pallas_src>

<mosaic_0001>
module attributes {stable_mosaic.version = 11 : i64} {
  func.func @_pos_embed_kernel_3d(%arg0: i32, %arg1: memref<1x1x32xf32, #tpu.memory_space<vmem>>, %arg2: memref<1x8x32xf32, #tpu.memory_space<vmem>>, %arg3: memref<2x8x32xf32, #tpu.memory_space<vmem>>, %arg4: memref<2x9x32xf32, #tpu.memory_space<vmem>>) attributes {dimension_semantics = [#tpu.dimension_semantics<parallel>], iteration_bounds = array<i64: 1>, scalar_prefetch = 0 : i64, scratch_operands = 0 : i64, tpu.core_type = #tpu.core_type<tc>, window_params = [{pipeline_mode = #tpu.pipeline_mode<synchronous>, transform_indices = @transform_0, window_bounds = array<i64: 1, 1, 32>}, {pipeline_mode = #tpu.pipeline_mode<synchronous>, transform_indices = @transform_1, window_bounds = array<i64: 1, 8, 32>}, {transform_indices = @transform_2, window_bounds = array<i64: 2, 8, 32>}, {transform_indices = @transform_3, window_bounds = array<i64: 2, 9, 32>}]} {
    %c0 = arith.constant 0 : index
    %c0_0 = arith.constant 0 : index
    %c0_1 = arith.constant 0 : index
    %0 = vector.load %arg1[%c0, %c0_0, %c0_1] : memref<1x1x32xf32, #tpu.memory_space<vmem>>, vector<1x1x32xf32>
    %1 = vector.shape_cast %0 : vector<1x1x32xf32> to vector<1x1x32xf32>
    %2 = vector.broadcast %1 : vector<1x1x32xf32> to vector<2x1x32xf32>
    %c0_2 = arith.constant 0 : index
    %c0_3 = arith.constant 0 : index
    %c0_4 = arith.constant 0 : index
    %3 = vector.load %arg4[%c0_2, %c0_3, %c0_4] : memref<2x9x32xf32, #tpu.memory_space<vmem>>, vector<2x1x32xf32>
    tpu.vector_store %arg4[%c0_2, %c0_3, %c0_4], %2 {strides = array<i32>} : memref<2x9x32xf32, #tpu.memory_space<vmem>>, vector<2x1x32xf32>,
    %c0_5 = arith.constant 0 : index
    %c0_6 = arith.constant 0 : index
    %c0_7 = arith.constant 0 : index
    %4 = vector.load %arg3[%c0_5, %c0_6, %c0_7] : memref<2x8x32xf32, #tpu.memory_space<vmem>>, vector<2x8x32xf32>
    %c0_8 = arith.constant 0 : index
    %c0_9 = arith.constant 0 : index
    %c0_10 = arith.constant 0 : index
    %5 = vector.load %arg2[%c0_8, %c0_9, %c0_10] : memref<1x8x32xf32, #tpu.memory_space<vmem>>, vector<1x8x32xf32>
    %6 = vector.broadcast %5 : vector<1x8x32xf32> to vector<2x8x32xf32>
    %7 = arith.addf %4, %6 : vector<2x8x32xf32>
    %c0_11 = arith.constant 0 : index
    %c1 = arith.constant 1 : index
    %c0_12 = arith.constant 0 : index
    %8 = vector.load %arg4[%c0_11, %c1, %c0_12] : memref<2x9x32xf32, #tpu.memory_space<vmem>>, vector<2x8x32xf32>
    tpu.vector_store %arg4[%c0_11, %c1, %c0_12], %7 {strides = array<i32>} : memref<2x9x32xf32, #tpu.memory_space<vmem>>, vector<2x8x32xf32>,
    return
  }
  func.func @transform_0(%arg0: i32) -> (i32, i32, i32) {
    %c0_i32 = arith.constant 0 : i32
    %c0_i32_0 = arith.constant 0 : i32
    %c0_i32_1 = arith.constant 0 : i32
    %c0_i32_2 = arith.constant 0 : i32
    return %c0_i32, %c0_i32_0, %c0_i32_1 : i32, i32, i32
  }
  func.func @transform_1(%arg0: i32) -> (i32, i32, i32) {
    %c0_i32 = arith.constant 0 : i32
    %c0_i32_0 = arith.constant 0 : i32
    %c0_i32_1 = arith.constant 0 : i32
    %c0_i32_2 = arith.constant 0 : i32
    return %c0_i32, %c0_i32_0, %c0_i32_1 : i32, i32, i32
  }
  func.func @transform_2(%arg0: i32) -> (i32, i32, i32) {
    %c0_i32 = arith.constant 0 : i32
    %c0_i32_0 = arith.constant 0 : i32
    %c0_i32_1 = arith.constant 0 : i32
    return %arg0, %c0_i32, %c0_i32_0 : i32, i32, i32
  }
  func.func @transform_3(%arg0: i32) -> (i32, i32, i32) {
    %c0_i32 = arith.constant 0 : i32
    %c0_i32_0 = arith.constant 0 : i32
    %c0_i32_1 = arith.constant 0 : i32
    return %arg0, %c0_i32, %c0_i32_0 : i32, i32, i32
  }
}

</mosaic_0001>

<llo_original>
// kernel: tpu_custom_call.1
$region0: #{tpu_custom_call.1}
  #allocation0 [shape = 'u32[]', space=smem, size = 0x4, offset = 0x4, fixed_abs, tag = 'smem constant byte address 0x4 - core index']
  #allocation1 [shape = 'u32[144,128]{1,0:T(1,128)}', space=vmem, size = 0x12000, scoped, tag = 'internal scratch']
  %s0 = inlined_call_operand.hbm [shape: f32[1,1,32], index: 0, kind: input, shape index: {}]
  %s1 = inlined_call_operand.hbm [shape: f32[1,8,32], index: 1, kind: input, shape index: {}]
  %s2 = inlined_call_operand.hbm [shape: f32[2,8,32], index: 2, kind: input, shape index: {}]
  %s3 = inlined_call_operand.vmem [shape: f32[2,9,32], index: 3, kind: output, shape index: {}]
  %s4 = sld [smem:[#allocation0]]
  $region34: #{tpu_custom_call.1} parent=0
    _
  %s6 = ssub.s32 1, %s4
  %s7 = scalar_select 0, %s6, %s4
  $region1: #{tpu_custom_call.1} parent=0
    #allocation2 [shape = 'u8[512]{0}', space=vmem, size = 0x400, scoped, tag = 'input window, operand 0, single buffered']
    #allocation3 [shape = 's32[1]{0}', space=sflag, size = 0x4, scoped, tag = 'scoped memory for tpu_custom_call.1']
    #allocation4 [shape = 'u8[4096]{0}', space=vmem, size = 0x1000, scoped, tag = 'input window, operand 1, single buffered']
    #allocation5 [shape = 's32[1]{0}', space=sflag, size = 0x4, scoped, tag = 'scoped memory for tpu_custom_call.1']
    #allocation6 [shape = 'u8[8192]{0}', space=vmem, size = 0x2000, scoped, tag = 'input window, operand 2, single buffered']
    %8 = vsyncpa [#allocation3], 0
    %9 = vsyncpa [#allocation5], 0
    // Predicated region
    $region2: #{tpu_custom_call.1} parent=1 // pred_check
      _
    $region3: #{tpu_custom_call.1} parent=1 // pred_check_branch
      %11 = sbr.rel (0) target = $region5
    $region4: #{tpu_custom_call.1} parent=1 // pred_region
      %s13 = ssub.s32 16, 16
      %14 = vsyncadd [#allocation3], %s13
      %s16 = sshll.u32 [#allocation2], 4
      %s17 = int_to_ptr.vmem [resolvable:$true] %s16
      %19 = dma.hbm_to_vmem [thread:$0]  %s0, 16, %s17, [#allocation3]
    $region5: #{tpu_custom_call.1} parent=1 // pred_fallthru
      _
    // Predicated region
    $region6: #{tpu_custom_call.1} parent=1 // pred_check
      _
    $region7: #{tpu_custom_call.1} parent=1 // pred_check_branch
      %21 = sbr.rel (0) target = $region9
    $region8: #{tpu_custom_call.1} parent=1 // pred_region
      %s23 = ssub.s32 128, 128
      %24 = vsyncadd [#allocation5], %s23
      %s26 = sshll.u32 [#allocation4], 4
      %s27 = int_to_ptr.vmem [resolvable:$true] %s26
      %29 = dma.hbm_to_vmem [thread:$0]  %s1, 128, %s27, [#allocation5]
    $region9: #{tpu_custom_call.1} parent=1 // pred_fallthru
      _
    // Predicated region
    $region10: #{tpu_custom_call.1} parent=1 // pred_check
      _
    $region11: #{tpu_custom_call.1} parent=1 // pred_check_branch
      %31 = sbr.rel (0) target = $region13
    $region12: #{tpu_custom_call.1} parent=1 // pred_region
      %s33 = ssub.s32 256, 256
      %34 = vsyncadd [#allocation5], %s33
      %s35 = sshll.u32 [#allocation6], 4
      %s36 = int_to_ptr.vmem [resolvable:$true] %s35
      %41 = dma.hbm_to_vmem [thread:$0]  %s2, 256, %s36, [#allocation5], 128, 128, 8
    $region13: #{tpu_custom_call.1} parent=1 // pred_fallthru
      _
    // Predicated region
    $region14: #{tpu_custom_call.1} parent=1 // pred_check
      _
    $region15: #{tpu_custom_call.1} parent=1 // pred_check_branch
      %43 = sbr.rel (0) target = $region17
    $region16: #{tpu_custom_call.1} parent=1 // pred_region
      %44 = dma.done [#allocation3], 16
    $region17: #{tpu_custom_call.1} parent=1 // pred_fallthru
      _
    // Predicated region
    $region18: #{tpu_custom_call.1} parent=1 // pred_check
      _
    $region19: #{tpu_custom_call.1} parent=1 // pred_check_branch
      %46 = sbr.rel (0) target = $region21
    $region20: #{tpu_custom_call.1} parent=1 // pred_region
      %47 = dma.done [#allocation5], 128
    $region21: #{tpu_custom_call.1} parent=1 // pred_fallthru
      _
    // Predicated region
    $region22: #{tpu_custom_call.1} parent=1 // pred_check
      _
    $region23: #{tpu_custom_call.1} parent=1 // pred_check_branch
      %49 = sbr.rel (0) target = $region25
    $region24: #{tpu_custom_call.1} parent=1 // pred_region
      %50 = dma.done [#allocation5], 256
    $region25: #{tpu_custom_call.1} parent=1 // pred_fallthru
      _
    %v51 = vld [vmem:[#allocation2] sm:$0x1]
    %vm52 = vcmask 253952
    %53 = vst.msk [vmem:[%s3] sm:$0x1] %vm52, %v51
    %54 = vst.msk [vmem:[%s3 + $0x10] sm:$0x1] %vm52, %v51
    %v55 = vld [vmem:[#allocation6] sm:$0xff]
    %v56 = vld [vmem:[#allocation6 + $0x8] sm:$0xff]
    %v57 = vld [vmem:[#allocation4] sm:$0xff]
    %v58 = vadd.f32 %v55, %v57
    %v59 = vadd.f32 %v56, %v57
    %vm60 = vcmask 261120
    %61 = vst.msk [vmem:[%s3 + $0x1] sm:$0xff] %vm60, %v58
    %62 = vst.msk [vmem:[%s3 + $0x11] sm:$0xff] %vm60, %v59
    // Predicated region
    $region26: #{tpu_custom_call.1} parent=1 // pred_check
      _
    $region27: #{tpu_custom_call.1} parent=1 // pred_check_branch
      %64 = sbr.rel (0) target = $region29
    $region28: #{tpu_custom_call.1} parent=1 // pred_region
      _
    $region29: #{tpu_custom_call.1} parent=1 // pred_fallthru
      _
    // Predicated region
    $region30: #{tpu_custom_call.1} parent=1 // pred_check
      _
    $region31: #{tpu_custom_call.1} parent=1 // pred_check_branch
      %66 = sbr.rel (0) target = $region33
    $region32: #{tpu_custom_call.1} parent=1 // pred_region
      _
    $region33: #{tpu_custom_call.1} parent=1 // pred_fallthru
      _
    %67 = vsyncpa [#allocation3], 1
    %68 = vsyncpa [#allocation5], 1

</llo_original>
